<compile_context>
chip_gen: v7x
topology: tpu7x:2x2x1
jax: 0.10.0
libtpu: 0.0.40
codegen_flags: <defaults>
</compile_context>

<pallas_src>
import functools

import jax
import jax.numpy as jnp
from jax import lax
from jax.experimental import pallas as pl
from jax.experimental.pallas import tpu as pltpu

_LANE = 128
_SUBLANE = 8


def _int_pow(p, n):
    """p**n for a positive python int n via exponentiation-by-squaring."""
    result = None
    while n > 0:
        if n & 1:
            result = p if result is None else result * p
        n >>= 1
        if n:
            p = p * p
    return result


def _vmem_budget():
    """(per-tile source budget bytes, scoped vmem limit bytes), generation-aware.

    v5e/v6e (128 MiB physical VMEM) can afford bigger tiles / a higher scoped
    limit; the conservative default is safe for v7x (64 MiB physical VMEM).
    """
    try:
        info = pltpu.get_tpu_info()
        vmem = getattr(info, "vmem_capacity_bytes", None)
        if vmem is not None and vmem >= 100 * (1 << 20):
            return 16 * (1 << 20), 64 * (1 << 20)
    except Exception:
        pass
    return 8 * (1 << 20), 32 * (1 << 20)


def _focal_kernel(t_ref, x_ref, out_ref, *, gamma, c_start, c_stop, rt,
                  rows_total, padded, ragged, dense_target, binary_target,
                  unrolled):
    step = pl.program_id(1)

    gamma_i = int(gamma)
    int_gamma = (float(gamma_i) == float(gamma)) and gamma >= 0.0

    if ragged:
        # Last spatial tile overhangs the array: rows >= rows_total - step*rt
        # read unspecified (possibly NaN) data and must be masked/sanitized.
        row = lax.broadcasted_iota(jnp.int32, (rt, _LANE), 0)
        row_valid = row < (rows_total - step * rt)
    else:
        row_valid = None

    if not dense_target:
        lbl = t_ref[0].astype(jnp.int32)                 # (rt, 128) labels
        valid = None
        if padded:
            valid = (lbl >= 0).astype(jnp.float32)       # pad sentinel is -1
        if ragged:
            rv = row_valid.astype(jnp.float32)
            valid = rv if valid is None else valid * rv

    def per_channel(x, t, valid_c):
        # x, t: (rt, 128) f32 ; returns an (8, 128) partial sum.
        e = jnp.exp(-jnp.abs(x))                          # EUP
        sp = jnp.log(1.0 + e)                             # EUP, shared softplus tail
        # stable BCE-with-logits: max(x,0) - x*t + log(1 + exp(-|x|))
        bce = jnp.maximum(x, 0.0) - x * t + sp
        z = x * (2.0 * t - 1.0)
        if dense_target and not binary_target:
            e_z = jnp.exp(-jnp.abs(z))                    # soft targets: no sharing
            sp_z = jnp.log(1.0 + e_z)
        else:
            e_z, sp_z = e, sp                             # |z| == |x| for hard targets
        if int_gamma:
            if gamma_i == 0:
                loss = bce
            else:
                # focal weight = sigmoid(-z)**gamma, computed without exp/log:
                # sigmoid(-z) = select(z>=0, e_z, 1) / (1 + e_z)
                p = jnp.where(z >= 0.0, e_z, 1.0) * pl.reciprocal(
                    1.0 + e_z, approx=False)
                loss = _int_pow(p, gamma_i) * bce
        else:
            invprobs = -(jnp.maximum(z, 0.0) + sp_z)      # logsigmoid(-z)
            loss = jnp.exp(gamma * invprobs) * bce
        if valid_c is not None:
            loss = loss * valid_c
        # fold (rt, 128) -> (8, 128) with plain VPU adds (no XLU, no scratch)
        return loss.reshape(rt // _SUBLANE, _SUBLANE, _LANE).sum(axis=0)

    def chan_body(cc, acc):
        x = x_ref[0, cc].astype(jnp.float32)
        if ragged:
            x = jnp.where(row_valid, x, 0.0)              # sanitize OOB garbage
        if dense_target:
            t_raw = t_ref[0, cc].astype(jnp.float32)
            if ragged:
                t_raw = jnp.where(row_valid, t_raw, -1.0)
            if padded or ragged:
                # TODO(synk): assumes legitimate dense targets are >= 0
                # (one-hot / soft probabilities); -1 is the pad sentinel.
                t = jnp.maximum(t_raw, 0.0)
                valid_c = (t_raw >= 0.0).astype(jnp.float32)
            else:
                t, valid_c = t_raw, None
        else:
            t = (lbl == cc).astype(jnp.float32)           # one-hot in-register
            valid_c = valid
        return acc + per_channel(x, t, valid_c)

    acc0 = jnp.zeros((_SUBLANE, _LANE), jnp.float32)
    if unrolled:
        acc = acc0
        for cc in range(c_start, c_stop):                 # static, small C
            acc = chan_body(cc, acc)
    else:
        acc = lax.fori_loop(c_start, c_stop, chan_body, acc0, unroll=2)

    out_ref[0, 0] = acc


def focal_loss(y_pred, y_true, *, gamma=2.0, include_background=False,
               binary_target=False, row_tile_cap=None, unroll_channels=16):
    """Pallas TPU implementation of FocalLoss.forward (reduction='mean')."""
    n, c, h, w = y_pred.shape
    s = h * w
    c_start = 0 if (include_background or c == 1) else 1
    c_fg = c - c_start
    count = float(n * c_fg * s)

    dense_target = (y_true.ndim != 3)

    # ---- layout: lane-dense (rows, 128); pad only to the next (8,128) tile ----
    rows = pl.cdiv(s, _LANE)
    rows_pad = max(_SUBLANE, pl.cdiv(rows, _SUBLANE) * _SUBLANE)
    s_pad = rows_pad * _LANE
    padded = (s_pad != s)          # <= 8*128-1 extra elements per (n,c) plane

    # ---- tile size: dtype/VMEM-budget aware, multiple of 8, balanced grid ----
    budget, vmem_limit = _vmem_budget()
    x_row = 2 * c * _LANE * y_pred.dtype.itemsize                 # double-buffered logits
    t_row = 2 * (c * _LANE * y_true.dtype.itemsize if dense_target
                 else _LANE * 4)                                   # labels / targets
    tmp_row = 6 * _LANE * 4                                        # f32 temporaries
    cap = max(_SUBLANE,
              (budget // (x_row + t_row + tmp_row)) // _SUBLANE * _SUBLANE)
    if row_tile_cap is not None:
        cap = max(_SUBLANE, min(cap, (row_tile_cap // _SUBLANE) * _SUBLANE))

    num_t = pl.cdiv(rows_pad, cap)
    rt = pl.cdiv(rows_pad, _SUBLANE * num_t) * _SUBLANE            # <= cap, <= rows_pad
    num_t = pl.cdiv(rows_pad, rt)
    ragged = (num_t * rt != rows_pad)

    # ---- inputs (single, small pad only when the spatial size requires it) ----
    x = y_pred.reshape(n, c, s)
    if padded:
        x = jnp.pad(x, ((0, 0), (0, 0), (0, s_pad - s)))
    x = x.reshape(n, c, rows_pad, _LANE)
    x_spec = pl.BlockSpec((1, c, rt, _LANE), lambda i, j: (i, 0, j, 0))

    if dense_target:
        tgt = y_true.reshape(n, c, s)
        if padded:
            tgt = jnp.pad(tgt, ((0, 0), (0, 0), (0, s_pad - s)),
                          constant_values=-1)
        tgt = tgt.reshape(n, c, rows_pad, _LANE)
        t_spec = pl.BlockSpec((1, c, rt, _LANE), lambda i, j: (i, 0, j, 0))
    else:
        tgt = y_true.reshape(n, s).astype(jnp.int32)
        if padded:
            tgt = jnp.pad(tgt, ((0, 0), (0, s_pad - s)), constant_values=-1)
        tgt = tgt.reshape(n, rows_pad, _LANE)
        t_spec = pl.BlockSpec((1, rt, _LANE), lambda i, j: (i, j, 0))

    kernel = functools.partial(
        _focal_kernel, gamma=float(gamma), c_start=c_start, c_stop=c, rt=rt,
        rows_total=rows_pad, padded=padded, ragged=ragged,
        dense_target=dense_target, binary_target=binary_target,
        unrolled=(c_fg <= unroll_channels))

    # advisory cost estimate: purely elementwise (no MXU), EUP/HBM bound
    elems = n * c_fg * num_t * rt * _LANE
    int_gamma = (float(int(gamma)) == float(gamma)) and gamma >= 0
    trans = 2 + (0 if int_gamma else 1) + \
        (2 if (dense_target and not binary_target) else 0)
    cost = pl.CostEstimate(
        flops=16 * elems,
        transcendentals=trans * elems,
        bytes_accessed=(x.size * x.dtype.itemsize
                        + tgt.size * tgt.dtype.itemsize
                        + n * num_t * _SUBLANE * _LANE * 4))

    partials = pl.pallas_call(
        kernel,
        out_shape=jax.ShapeDtypeStruct((n, num_t, _SUBLANE, _LANE), jnp.float32),
        grid_spec=pltpu.PrefetchScalarGridSpec(
            num_scalar_prefetch=0,
            grid=(n, num_t),
            in_specs=[t_spec, x_spec],
            out_specs=pl.BlockSpec((1, 1, _SUBLANE, _LANE),
                                   lambda i, j: (i, j, 0, 0)),
        ),
        compiler_params=pltpu.CompilerParams(
            dimension_semantics=("parallel", "parallel"),
            vmem_limit_bytes=vmem_limit,
        ),
        cost_estimate=cost,
    )(tgt, x)

    # reduction='mean' over all (foreground) elements; padding contributes 0.
    return jnp.sum(partials) / count
    # TODO(synk): only reduction='mean' (the module default) is implemented.


def _logsigmoid(z):
    return -(jnp.maximum(-z, 0.0) + jnp.log(1.0 + jnp.exp(-jnp.abs(z))))


def _reference_focal_loss(y_pred, y_true, *, gamma=2.0, include_background=False):
    """Pure-JAX reference (exact MONAI formulation) for correctness check."""
    num_classes = y_pred.shape[1]
    if y_true.ndim == 3:
        y_true = jnp.transpose(
            jax.nn.one_hot(y_true, num_classes, dtype=jnp.float32), (0, 3, 1, 2))
    if (not include_background) and num_classes > 1:
        y_pred = y_pred[:, 1:]
        y_true = y_true[:, 1:]
    x = y_pred.astype(jnp.float32)
    t = y_true.astype(jnp.float32)
    max_val = jnp.maximum(-x, 0.0)
    bce = x - x * t + max_val + jnp.log(jnp.exp(-max_val) + jnp.exp(-x - max_val))
    invprobs = _logsigmoid(-x * (t * 2.0 - 1.0))
    loss = jnp.exp(invprobs * gamma) * bce
    return jnp.mean(loss)


if __name__ == "__main__":
    key = jax.random.PRNGKey(0)
    k_pred, k_true, k_pred2, k_true2 = jax.random.split(key, 4)

    # 1) integer label map (the module's main path)
    N, C, H, W = 2, 4, 16, 16
    y_pred = jax.random.normal(k_pred, (N, C, H, W), dtype=jnp.float32)
    y_true = jax.random.randint(k_true, (N, H, W), 0, C, dtype=jnp.int32)

    loss = jax.block_until_ready(
        focal_loss(y_pred, y_true, gamma=2.0, include_background=False))
    ref = jax.block_until_ready(
        _reference_focal_loss(y_pred, y_true, gamma=2.0, include_background=False))
    assert jnp.allclose(loss, ref, rtol=1e-5, atol=1e-6), (loss, ref)

    # 2) dense float (one-hot) targets — exercises the dense-target path
    y_true_oh = jnp.transpose(jax.nn.one_hot(y_true, C, dtype=jnp.float32),
                              (0, 3, 1, 2))
    loss_d = jax.block_until_ready(
        focal_loss(y_pred, y_true_oh, gamma=2.0, include_background=False))
    assert jnp.allclose(loss_d, ref, rtol=1e-5, atol=1e-6), (loss_d, ref)

    # 3) multi-tile grid with a ragged last tile (forced small row tile)
    N2, C2, H2, W2 = 1, 3, 52, 52
    y_pred2 = jax.random.normal(k_pred2, (N2, C2, H2, W2), dtype=jnp.float32)
    y_true2 = jax.random.randint(k_true2, (N2, H2, W2), 0, C2, dtype=jnp.int32)
    loss_r = jax.block_until_ready(
        focal_loss(y_pred2, y_true2, gamma=2.0, include_background=False,
                   row_tile_cap=16))
    ref_r = jax.block_until_ready(
        _reference_focal_loss(y_pred2, y_true2, gamma=2.0,
                              include_background=False))
    assert jnp.allclose(loss_r, ref_r, rtol=1e-5, atol=1e-6), (loss_r, ref_r)

    print("KERNEL_OK")
</pallas_src>

<mosaic_0001>
module attributes {stable_mosaic.version = 11 : i64} {
  func.func @_focal_kernel(%arg0: i32, %arg1: i32, %arg2: memref<1x8x128xi32, #tpu.memory_space<vmem>>, %arg3: memref<1x4x8x128xf32, #tpu.memory_space<vmem>>, %arg4: memref<1x1x8x128xf32, #tpu.memory_space<vmem>>) attributes {dimension_semantics = [#tpu.dimension_semantics<parallel>, #tpu.dimension_semantics<parallel>], iteration_bounds = array<i64: 2, 1>, scalar_prefetch = 0 : i64, scratch_operands = 0 : i64, tpu.core_type = #tpu.core_type<tc>, window_params = [{transform_indices = @transform_0, window_bounds = array<i64: 1, 8, 128>}, {transform_indices = @transform_1, window_bounds = array<i64: 1, 4, 8, 128>}, {transform_indices = @transform_2, window_bounds = array<i64: 1, 1, 8, 128>}]} {
    %c0 = arith.constant 0 : index
    %c0_0 = arith.constant 0 : index
    %c0_1 = arith.constant 0 : index
    %0 = vector.load %arg2[%c0, %c0_0, %c0_1] : memref<1x8x128xi32, #tpu.memory_space<vmem>>, vector<1x8x128xi32>
    %1 = vector.shape_cast %0 : vector<1x8x128xi32> to vector<8x128xi32>
    %c0_i32 = arith.constant 0 : i32
    %2 = vector.broadcast %c0_i32 : i32 to vector<8x128xi32>
    %3 = arith.cmpi sge, %1, %2 : vector<8x128xi32>
    %4 = arith.extui %3 : vector<8x128xi1> to vector<8x128xi32>
    %5 = arith.sitofp %4 : vector<8x128xi32> to vector<8x128xf32>
    %cst = arith.constant 0.000000e+00 : f32
    %6 = vector.broadcast %cst : f32 to vector<8x128xf32>
    %c0_2 = arith.constant 0 : index
    %c1 = arith.constant 1 : index
    %c0_3 = arith.constant 0 : index
    %c0_4 = arith.constant 0 : index
    %7 = vector.load %arg3[%c0_2, %c1, %c0_3, %c0_4] : memref<1x4x8x128xf32, #tpu.memory_space<vmem>>, vector<1x1x8x128xf32>
    %8 = vector.shape_cast %7 : vector<1x1x8x128xf32> to vector<8x128xf32>
    %c1_i32 = arith.constant 1 : i32
    %9 = vector.broadcast %c1_i32 : i32 to vector<8x128xi32>
    %10 = arith.cmpi eq, %1, %9 : vector<8x128xi32>
    %11 = arith.extui %10 : vector<8x128xi1> to vector<8x128xi32>
    %12 = arith.sitofp %11 : vector<8x128xi32> to vector<8x128xf32>
    %13 = math.absf %8 : vector<8x128xf32>
    %cst_5 = arith.constant 0.000000e+00 : f32
    %14 = vector.broadcast %cst_5 : f32 to vector<8x128xf32>
    %15 = arith.subf %14, %13 : vector<8x128xf32>
    %16 = math.exp %15 : vector<8x128xf32>
    %cst_6 = arith.constant 1.000000e+00 : f32
    %17 = vector.broadcast %cst_6 : f32 to vector<8x128xf32>
    %18 = arith.addf %17, %16 : vector<8x128xf32>
    %19 = math.log %18 : vector<8x128xf32>
    %cst_7 = arith.constant 0.000000e+00 : f32
    %20 = vector.broadcast %cst_7 : f32 to vector<8x128xf32>
    %21 = arith.maximumf %8, %20 : vector<8x128xf32>
    %22 = arith.mulf %8, %12 : vector<8x128xf32>
    %23 = arith.subf %21, %22 : vector<8x128xf32>
    %24 = arith.addf %23, %19 : vector<8x128xf32>
    %cst_8 = arith.constant 2.000000e+00 : f32
    %25 = vector.broadcast %cst_8 : f32 to vector<8x128xf32>
    %26 = arith.mulf %25, %12 : vector<8x128xf32>
    %cst_9 = arith.constant 1.000000e+00 : f32
    %27 = vector.broadcast %cst_9 : f32 to vector<8x128xf32>
    %28 = arith.subf %26, %27 : vector<8x128xf32>
    %29 = arith.mulf %8, %28 : vector<8x128xf32>
    %cst_10 = arith.constant 0.000000e+00 : f32
    %30 = vector.broadcast %cst_10 : f32 to vector<8x128xf32>
    %31 = arith.cmpf oge, %29, %30 : vector<8x128xf32>
    %cst_11 = arith.constant 1.000000e+00 : f32
    %32 = vector.broadcast %cst_11 : f32 to vector<8x128xf32>
    %33 = arith.select %31, %16, %32 : vector<8x128xi1>, vector<8x128xf32>
    %cst_12 = arith.constant 1.000000e+00 : f32
    %34 = vector.broadcast %cst_12 : f32 to vector<8x128xf32>
    %35 = arith.addf %34, %16 : vector<8x128xf32>
    %36 = tpu.reciprocal %35 : vector<8x128xf32> -> vector<8x128xf32>
    %37 = arith.mulf %33, %36 : vector<8x128xf32>
    %38 = arith.mulf %37, %37 : vector<8x128xf32>
    %39 = arith.mulf %38, %24 : vector<8x128xf32>
    %40 = arith.mulf %39, %5 : vector<8x128xf32>
    %41 = vector.shape_cast %40 : vector<8x128xf32> to vector<1x8x128xf32>
    %cst_13 = arith.constant dense<0.000000e+00> : vector<8x128xf32>
    %42 = vector.multi_reduction <add>, %41, %cst_13 [0] : vector<1x8x128xf32> to vector<8x128xf32>
    %43 = arith.addf %6, %42 : vector<8x128xf32>
    %c0_14 = arith.constant 0 : index
    %c2 = arith.constant 2 : index
    %c0_15 = arith.constant 0 : index
    %c0_16 = arith.constant 0 : index
    %44 = vector.load %arg3[%c0_14, %c2, %c0_15, %c0_16] : memref<1x4x8x128xf32, #tpu.memory_space<vmem>>, vector<1x1x8x128xf32>
    %45 = vector.shape_cast %44 : vector<1x1x8x128xf32> to vector<8x128xf32>
    %c2_i32 = arith.constant 2 : i32
    %46 = vector.broadcast %c2_i32 : i32 to vector<8x128xi32>
    %47 = arith.cmpi eq, %1, %46 : vector<8x128xi32>
    %48 = arith.extui %47 : vector<8x128xi1> to vector<8x128xi32>
    %49 = arith.sitofp %48 : vector<8x128xi32> to vector<8x128xf32>
    %50 = math.absf %45 : vector<8x128xf32>
    %cst_17 = arith.constant 0.000000e+00 : f32
    %51 = vector.broadcast %cst_17 : f32 to vector<8x128xf32>
    %52 = arith.subf %51, %50 : vector<8x128xf32>
    %53 = math.exp %52 : vector<8x128xf32>
    %cst_18 = arith.constant 1.000000e+00 : f32
    %54 = vector.broadcast %cst_18 : f32 to vector<8x128xf32>
    %55 = arith.addf %54, %53 : vector<8x128xf32>
    %56 = math.log %55 : vector<8x128xf32>
    %cst_19 = arith.constant 0.000000e+00 : f32
    %57 = vector.broadcast %cst_19 : f32 to vector<8x128xf32>
    %58 = arith.maximumf %45, %57 : vector<8x128xf32>
    %59 = arith.mulf %45, %49 : vector<8x128xf32>
    %60 = arith.subf %58, %59 : vector<8x128xf32>
    %61 = arith.addf %60, %56 : vector<8x128xf32>
    %cst_20 = arith.constant 2.000000e+00 : f32
    %62 = vector.broadcast %cst_20 : f32 to vector<8x128xf32>
    %63 = arith.mulf %62, %49 : vector<8x128xf32>
    %cst_21 = arith.constant 1.000000e+00 : f32
    %64 = vector.broadcast %cst_21 : f32 to vector<8x128xf32>
    %65 = arith.subf %63, %64 : vector<8x128xf32>
    %66 = arith.mulf %45, %65 : vector<8x128xf32>
    %cst_22 = arith.constant 0.000000e+00 : f32
    %67 = vector.broadcast %cst_22 : f32 to vector<8x128xf32>
    %68 = arith.cmpf oge, %66, %67 : vector<8x128xf32>
    %cst_23 = arith.constant 1.000000e+00 : f32
    %69 = vector.broadcast %cst_23 : f32 to vector<8x128xf32>
    %70 = arith.select %68, %53, %69 : vector<8x128xi1>, vector<8x128xf32>
    %cst_24 = arith.constant 1.000000e+00 : f32
    %71 = vector.broadcast %cst_24 : f32 to vector<8x128xf32>
    %72 = arith.addf %71, %53 : vector<8x128xf32>
    %73 = tpu.reciprocal %72 : vector<8x128xf32> -> vector<8x128xf32>
    %74 = arith.mulf %70, %73 : vector<8x128xf32>
    %75 = arith.mulf %74, %74 : vector<8x128xf32>
    %76 = arith.mulf %75, %61 : vector<8x128xf32>
    %77 = arith.mulf %76, %5 : vector<8x128xf32>
    %78 = vector.shape_cast %77 : vector<8x128xf32> to vector<1x8x128xf32>
    %cst_25 = arith.constant dense<0.000000e+00> : vector<8x128xf32>
    %79 = vector.multi_reduction <add>, %78, %cst_25 [0] : vector<1x8x128xf32> to vector<8x128xf32>
    %80 = arith.addf %43, %79 : vector<8x128xf32>
    %c0_26 = arith.constant 0 : index
    %c3 = arith.constant 3 : index
    %c0_27 = arith.constant 0 : index
    %c0_28 = arith.constant 0 : index
    %81 = vector.load %arg3[%c0_26, %c3, %c0_27, %c0_28] : memref<1x4x8x128xf32, #tpu.memory_space<vmem>>, vector<1x1x8x128xf32>
    %82 = vector.shape_cast %81 : vector<1x1x8x128xf32> to vector<8x128xf32>
    %c3_i32 = arith.constant 3 : i32
    %83 = vector.broadcast %c3_i32 : i32 to vector<8x128xi32>
    %84 = arith.cmpi eq, %1, %83 : vector<8x128xi32>
    %85 = arith.extui %84 : vector<8x128xi1> to vector<8x128xi32>
    %86 = arith.sitofp %85 : vector<8x128xi32> to vector<8x128xf32>
    %87 = math.absf %82 : vector<8x128xf32>
    %cst_29 = arith.constant 0.000000e+00 : f32
    %88 = vector.broadcast %cst_29 : f32 to vector<8x128xf32>
    %89 = arith.subf %88, %87 : vector<8x128xf32>
    %90 = math.exp %89 : vector<8x128xf32>
    %cst_30 = arith.constant 1.000000e+00 : f32
    %91 = vector.broadcast %cst_30 : f32 to vector<8x128xf32>
    %92 = arith.addf %91, %90 : vector<8x128xf32>
    %93 = math.log %92 : vector<8x128xf32>
    %cst_31 = arith.constant 0.000000e+00 : f32
    %94 = vector.broadcast %cst_31 : f32 to vector<8x128xf32>
    %95 = arith.maximumf %82, %94 : vector<8x128xf32>
    %96 = arith.mulf %82, %86 : vector<8x128xf32>
    %97 = arith.subf %95, %96 : vector<8x128xf32>
    %98 = arith.addf %97, %93 : vector<8x128xf32>
    %cst_32 = arith.constant 2.000000e+00 : f32
    %99 = vector.broadcast %cst_32 : f32 to vector<8x128xf32>
    %100 = arith.mulf %99, %86 : vector<8x128xf32>
    %cst_33 = arith.constant 1.000000e+00 : f32
    %101 = vector.broadcast %cst_33 : f32 to vector<8x128xf32>
    %102 = arith.subf %100, %101 : vector<8x128xf32>
    %103 = arith.mulf %82, %102 : vector<8x128xf32>
    %cst_34 = arith.constant 0.000000e+00 : f32
    %104 = vector.broadcast %cst_34 : f32 to vector<8x128xf32>
    %105 = arith.cmpf oge, %103, %104 : vector<8x128xf32>
    %cst_35 = arith.constant 1.000000e+00 : f32
    %106 = vector.broadcast %cst_35 : f32 to vector<8x128xf32>
    %107 = arith.select %105, %90, %106 : vector<8x128xi1>, vector<8x128xf32>
    %cst_36 = arith.constant 1.000000e+00 : f32
    %108 = vector.broadcast %cst_36 : f32 to vector<8x128xf32>
    %109 = arith.addf %108, %90 : vector<8x128xf32>
    %110 = tpu.reciprocal %109 : vector<8x128xf32> -> vector<8x128xf32>
    %111 = arith.mulf %107, %110 : vector<8x128xf32>
    %112 = arith.mulf %111, %111 : vector<8x128xf32>
    %113 = arith.mulf %112, %98 : vector<8x128xf32>
    %114 = arith.mulf %113, %5 : vector<8x128xf32>
    %115 = vector.shape_cast %114 : vector<8x128xf32> to vector<1x8x128xf32>
    %cst_37 = arith.constant dense<0.000000e+00> : vector<8x128xf32>
    %116 = vector.multi_reduction <add>, %115, %cst_37 [0] : vector<1x8x128xf32> to vector<8x128xf32>
    %117 = arith.addf %80, %116 : vector<8x128xf32>
    %c0_38 = arith.constant 0 : index
    %c0_39 = arith.constant 0 : index
    %c0_40 = arith.constant 0 : index
    %c0_41 = arith.constant 0 : index
    %118 = vector.load %arg4[%c0_38, %c0_39, %c0_40, %c0_41] : memref<1x1x8x128xf32, #tpu.memory_space<vmem>>, vector<1x1x8x128xf32>
    %119 = vector.shape_cast %118 : vector<1x1x8x128xf32> to vector<8x128xf32>
    %120 = vector.shape_cast %117 : vector<8x128xf32> to vector<1x1x8x128xf32>
    tpu.vector_store %arg4[%c0_38, %c0_39, %c0_40, %c0_41], %120 {strides = array<i32>} : memref<1x1x8x128xf32, #tpu.memory_space<vmem>>, vector<1x1x8x128xf32>,
    return
  }
  func.func @transform_0(%arg0: i32, %arg1: i32) -> (i32, i32, i32) {
    %c0_i32 = arith.constant 0 : i32
    %c0_i32_0 = arith.constant 0 : i32
    return %arg0, %arg1, %c0_i32 : i32, i32, i32
  }
  func.func @transform_1(%arg0: i32, %arg1: i32) -> (i32, i32, i32, i32) {
    %c0_i32 = arith.constant 0 : i32
    %c0_i32_0 = arith.constant 0 : i32
    %c0_i32_1 = arith.constant 0 : i32
    return %arg0, %c0_i32, %arg1, %c0_i32_0 : i32, i32, i32, i32
  }
  func.func @transform_2(%arg0: i32, %arg1: i32) -> (i32, i32, i32, i32) {
    %c0_i32 = arith.constant 0 : i32
    %c0_i32_0 = arith.constant 0 : i32
    %c0_i32_1 = arith.constant 0 : i32
    return %arg0, %arg1, %c0_i32, %c0_i32_0 : i32, i32, i32, i32
  }
}

</mosaic_0001>

<llo_original>
// kernel: tpu_custom_call.1
$region0: #{tpu_custom_call.1}
  #allocation0 [shape = 'u32[]', space=smem, size = 0x4, offset = 0x4, fixed_abs, tag = 'smem constant byte address 0x4 - core index']
  #allocation1 [shape = 'u32[144,128]{1,0:T(1,128)}', space=vmem, size = 0x12000, scoped, tag = 'internal scratch']
  %s0 = inlined_call_operand.hbm [shape: s32[2,8,128], index: 0, kind: input, shape index: {}]
  %s1 = inlined_call_operand.hbm [shape: f32[2,4,8,128], index: 1, kind: input, shape index: {}]
  %s2 = inlined_call_operand.hbm [shape: f32[2,1,8,128], index: 2, kind: output, shape index: {}]
  %s3 = sld [smem:[#allocation0]]
  $region49: #{tpu_custom_call.1} parent=0
    _
  %s5 = ssub.s32 1, %s3
  %s6 = scalar_select 0, %s5, %s3
  $region1: #{tpu_custom_call.1} parent=0
    #allocation2 [shape = 'u8[8192]{0}', space=vmem, size = 0x2000, scoped, tag = 'input window, operand 0']
    #allocation3 [shape = 's32[2]{0}', space=sflag, size = 0x8, scoped, tag = 'scoped memory for tpu_custom_call.1']
    #allocation4 [shape = 's32[2]{0}', space=sflag, size = 0x8, scoped, tag = 'scoped memory for tpu_custom_call.1']
    #allocation5 [shape = 'u8[32768]{0}', space=vmem, size = 0x8000, scoped, tag = 'input window, operand 1']
    #allocation6 [shape = 's32[2]{0}', space=sflag, size = 0x8, scoped, tag = 'scoped memory for tpu_custom_call.1']
    #allocation7 [shape = 'u8[8192]{0}', space=vmem, size = 0x2000, scoped, tag = 'output window, operand 0']
    %7 = vsyncpa [#allocation3], 0
    %s8 = scalar_lea.sflag [#allocation3], 1
    %9 = vsyncpa %s8, 0
    %10 = vsyncpa [#allocation6], 0
    %s11 = scalar_lea.sflag [#allocation6], 1
    %12 = vsyncpa %s11, 0
    %13 = vsyncpa [#allocation4], 0
    %s14 = scalar_lea.sflag [#allocation4], 1
    %15 = vsyncpa %s14, 0
    loop: start=0, step=1, limit=4
    $region2: #{tpu_custom_call.1} parent=1 // loop_pre_header
      _
    $region3: #{tpu_custom_call.1} parent=1 // loop_header
      %s17 = sphi 0, %s21
      %p18 = scmp.ge.s32.totalorder %s17, 4
      %s24 = sphi 0, %s36
      %s25 = sphi 0, %s32
      %s26 = sphi 0, %s24
      %s27 = sphi 0, %s25
      %s28 = sphi 0, %s26
      %s29 = sphi 0, %s27
      %s41 = sphi 0, %s43
      %s44 = sphi 0, %s41
      %s45 = sphi 0, %s44
      %s61 = sphi 0, %s45
      %s69 = sphi 0, %s71
      %s72 = sphi 0, %s69
      %s73 = sphi 0, %s72
      %s89 = sphi 0, %s73
      %s97 = sphi 0, %s99
      %s100 = sphi 0, %s97
      %s101 = sphi 0, %s100
      %s117 = sphi 0, %s101
    $region4: #{tpu_custom_call.1} parent=1 // loop_header_branch
      %20 = sbr.rel (%p18) target = $region8
    $region5: #{tpu_custom_call.1} parent=1 // loop_body
      %s22 = ssub.s32 %s17, 1
      %s23 = ssub.s32 %s17, 2
      %s30 = sadd.s32 1, %s25
      %p31 = scmp.ge.s32.totalorder %s30, 1
      %s32 = scalar_select %p31, 0, %s30
      %s33 = sadd.s32 1, %s24
      %s34 = scalar_select %p31, %s33, %s24
      %p35 = scmp.ge.s32.totalorder %s34, 2
      %s36 = scalar_select %p35, 0, %s34
      %s37 = ssub.s32 %s24, %s36
      %s38 = ssub.s32 %s25, %s32
      %s39 = sor.u32 %s37, %s38
      %p40 = scmp.eq.s32.totalorder %s39, 0
      %s42 = sadd.s32 %s41, 1
      %s43 = scalar_select %p40, %s41, %s42
      %p46 = pneg %p40
      %p47 = scmp.eq.s32.totalorder %s17, 1
      %p48 = por %p46, %p47
      %p49 = scmp.ne.s32.totalorder %s41, %s44
      %p50 = scmp.eq.s32.totalorder %s17, 0
      %p51 = por %p49, %p50
      %p52 = scmp.ne.s32.totalorder %s41, %s44
      %p53 = scmp.eq.s32.totalorder %s22, 1
      %p54 = por %p52, %p53
      %p55 = scmp.ne.s32.totalorder %s44, %s45
      %p56 = scmp.eq.s32.totalorder %s22, 0
      %p57 = por %p55, %p56
      %p58 = scmp.ne.s32.totalorder %s44, %s45
      %p59 = scmp.eq.s32.totalorder %s23, 1
      %p60 = por %p58, %p59
      %p62 = scmp.ne.s32.totalorder %s45, %s61
      %p63 = scmp.eq.s32.totalorder %s23, 0
      %p64 = por %p62, %p63
      %s65 = ssub.s32 %s24, %s36
      %s66 = ssub.s32 %s25, %s32
      %s67 = sor.u32 %s65, %s66
      %p68 = scmp.eq.s32.totalorder %s67, 0
      %s70 = sadd.s32 %s69, 1
      %s71 = scalar_select %p68, %s69, %s70
      %p74 = pneg %p68
      %p75 = scmp.eq.s32.totalorder %s17, 1
      %p76 = por %p74, %p75
      %p77 = scmp.ne.s32.totalorder %s69, %s72
      %p78 = scmp.eq.s32.totalorder %s17, 0
      %p79 = por %p77, %p78
      %p80 = scmp.ne.s32.totalorder %s69, %s72
      %p81 = scmp.eq.s32.totalorder %s22, 1
      %p82 = por %p80, %p81
      %p83 = scmp.ne.s32.totalorder %s72, %s73
      %p84 = scmp.eq.s32.totalorder %s22, 0
      %p85 = por %p83, %p84
      %p86 = scmp.ne.s32.totalorder %s72, %s73
      %p87 = scmp.eq.s32.totalorder %s23, 1
      %p88 = por %p86, %p87
      %p90 = scmp.ne.s32.totalorder %s73, %s89
      %p91 = scmp.eq.s32.totalorder %s23, 0
      %p92 = por %p90, %p91
      %s93 = ssub.s32 %s24, %s36
      %s94 = ssub.s32 %s25, %s32
      %s95 = sor.u32 %s93, %s94
      %p96 = scmp.eq.s32.totalorder %s95, 0
      %s98 = sadd.s32 %s97, 1
      %s99 = scalar_select %p96, %s97, %s98
      %p102 = pneg %p96
      %p103 = scmp.eq.s32.totalorder %s17, 1
      %p104 = por %p102, %p103
      %p105 = scmp.ne.s32.totalorder %s97, %s100
      %p106 = scmp.eq.s32.totalorder %s17, 0
      %p107 = por %p105, %p106
      %p108 = scmp.ne.s32.totalorder %s97, %s100
      %p109 = scmp.eq.s32.totalorder %s22, 1
      %p110 = por %p108, %p109
      %p111 = scmp.ne.s32.totalorder %s100, %s101
      %p112 = scmp.eq.s32.totalorder %s22, 0
      %p113 = por %p111, %p112
      %p114 = scmp.ne.s32.totalorder %s100, %s101
      %p115 = scmp.eq.s32.totalorder %s23, 1
      %p116 = por %p114, %p115
      %p118 = scmp.ne.s32.totalorder %s101, %s117
      %p119 = scmp.eq.s32.totalorder %s23, 0
      %p120 = por %p118, %p119
      %p121 = scmp.le.s32.totalorder 1, %s17
      %p122 = scmp.lt.s32.totalorder %s17, 3
      %p123 = pnand %p121, %p122
      %p124 = pneg %p123
      // Predicated region
      $region9: #{tpu_custom_call.1} parent=5 // pred_check
        _
      $region10: #{tpu_custom_call.1} parent=5 // pred_check_branch
        %126 = sbr.rel (%p123) target = $region12
      $region11: #{tpu_custom_call.1} parent=5 // pred_region
        %s127 = ssub.s32 %s17, 1
      $region12: #{tpu_custom_call.1} parent=5 // pred_fallthru
        _
      %p128 = scmp.lt.s32.totalorder %s17, 2
      // Predicated region
      $region13: #{tpu_custom_call.1} parent=5 // pred_check
        %p129 = pneg %p128
      $region14: #{tpu_custom_call.1} parent=5 // pred_check_branch
        %131 = sbr.rel (%p129) target = $region16
      $region15: #{tpu_custom_call.1} parent=5 // pred_region
        // Predicated region
        $region17: #{tpu_custom_call.1} parent=15 // pred_check
          %p132 = pneg %p51
        $region18: #{tpu_custom_call.1} parent=15 // pred_check_branch
          %134 = sbr.rel (%p132) target = $region20
        $region19: #{tpu_custom_call.1} parent=15 // pred_region
          %s135 = sand.u32 %s41, 1
          %s136 = scalar_lea.sflag [#allocation3], %s135
          %s137 = sand.u32 %s41, 1
          %s138 = smul.addr %s137, 8
          %s139 = scalar_lea.vmem [#allocation2], %s138
          %s141 = ssub.s32 128, 128
          %142 = vsyncadd %s136, %s141
          %s143 = sadd.s32 %s25, %s24
          %s144 = smul.addr %s143, 128
          %s145 = scalar_lea.hbm %s0, %s144
          %s147 = sshll.u32 %s139, 4
          %s148 = int_to_ptr.vmem [resolvable:$true] %s147
          %150 = dma.hbm_to_vmem [thread:$0]  %s145, 128, %s148, %s136
        $region20: #{tpu_custom_call.1} parent=15 // pred_fallthru
          _
        // Predicated region
        $region21: #{tpu_custom_call.1} parent=15 // pred_check
          %p151 = pneg %p79
        $region22: #{tpu_custom_call.1} parent=15 // pred_check_branch
          %153 = sbr.rel (%p151) target = $region24
        $region23: #{tpu_custom_call.1} parent=15 // pred_region
          %s154 = sand.u32 %s69, 1
          %s155 = scalar_lea.sflag [#allocation6], %s154
          %s156 = sand.u32 %s69, 1
          %s157 = smul.addr %s156, 32
          %s158 = scalar_lea.vmem [#allocation5], %s157
          %s160 = ssub.s32 512, 512
          %161 = vsyncadd %s155, %s160
          %s162 = smul.addr %s24, 4
          %s163 = sadd.s32 %s25, %s162
          %s164 = smul.addr %s163, 128
          %s165 = scalar_lea.hbm %s1, %s164
          %s166 = sshll.u32 %s158, 4
          %s167 = int_to_ptr.vmem [resolvable:$true] %s166
          %172 = dma.hbm_to_vmem [thread:$0]  %s165, 512, %s167, %s155, 128, 128, 8
        $region24: #{tpu_custom_call.1} parent=15 // pred_fallthru
          _
      $region16: #{tpu_custom_call.1} parent=5 // pred_fallthru
        _
      %p173 = scmp.le.s32.totalorder 1, %s17
      %p174 = scmp.lt.s32.totalorder %s17, 3
      %p175 = pnand %p173, %p174
      %p176 = pneg %p175
      // Predicated region
      $region25: #{tpu_custom_call.1} parent=5 // pred_check
        _
      $region26: #{tpu_custom_call.1} parent=5 // pred_check_branch
        %178 = sbr.rel (%p175) target = $region28
      $region27: #{tpu_custom_call.1} parent=5 // pred_region
        %s179 = ssub.s32 %s17, 1
        %s180 = sand.u32 %s44, 1
        %s181 = scalar_lea.sflag [#allocation3], %s180
        %s182 = sand.u32 %s44, 1
        %s183 = smul.addr %s182, 8
        %s184 = scalar_lea.vmem [#allocation2], %s183
        // Predicated region
        $region29: #{tpu_custom_call.1} parent=27 // pred_check
          %p185 = pneg %p57
        $region30: #{tpu_custom_call.1} parent=27 // pred_check_branch
          %187 = sbr.rel (%p185) target = $region32
        $region31: #{tpu_custom_call.1} parent=27 // pred_region
          %188 = dma.done %s181, 128
        $region32: #{tpu_custom_call.1} parent=27 // pred_fallthru
          _
        %s189 = sand.u32 %s72, 1
        %s190 = scalar_lea.sflag [#allocation6], %s189
        %s191 = sand.u32 %s72, 1
        %s192 = smul.addr %s191, 32
        %s193 = scalar_lea.vmem [#allocation5], %s192
        // Predicated region
        $region33: #{tpu_custom_call.1} parent=27 // pred_check
          %p194 = pneg %p85
        $region34: #{tpu_custom_call.1} parent=27 // pred_check_branch
          %196 = sbr.rel (%p194) target = $region36
        $region35: #{tpu_custom_call.1} parent=27 // pred_region
          %197 = dma.done %s190, 512
        $region36: #{tpu_custom_call.1} parent=27 // pred_fallthru
          _
        %s198 = sand.u32 %s44, 1
        %s199 = scalar_lea.sflag [#allocation3], %s198
        %s200 = sand.u32 %s44, 1
        %s201 = smul.addr %s200, 8
        %s202 = scalar_lea.vmem [#allocation2], %s201
        %p203 = pneg %p57
        %p204 = pneg %p54
        %s205 = sand.u32 %s72, 1
        %s206 = scalar_lea.sflag [#allocation6], %s205
        %s207 = sand.u32 %s72, 1
        %s208 = smul.addr %s207, 32
        %s209 = scalar_lea.vmem [#allocation5], %s208
        %p210 = pneg %p85
        %p211 = pneg %p82
        %p212 = pneg %p113
        %p213 = pneg %p110
        %s214 = sand.u32 %s100, 1
        %s215 = scalar_lea.sflag [#allocation4], %s214
        %s216 = sand.u32 %s100, 1
        %s217 = smul.addr %s216, 8
        %s218 = scalar_lea.vmem [#allocation7], %s217
        %v219 = vld [vmem:[%s184] sm:$0xff]
        %vm220 = vcmp.ge.s32.totalorder %v219, 0
        %v221 = vsel %vm220, 1, 0
        %v222 = vcvt.s32.f32 %v221
        %s223 = scalar_lea.vmem %s193, 8 [#allocation5]
        %v224 = vld [vmem:[%s223] sm:$0xff]
        %vm225 = vcmp.eq.s32.totalorder %v219, 1
        %v226 = vsel %vm225, 1, 0
        %v227 = vcvt.s32.f32 %v226
        %v228 = vand.u32 2147483647, %v224
        %v229 = vsub.f32 0.0, %v228
        %v230 = vmul.f32 %v229, 1.442695
        %v231 = vpow.pop %v230
        %v232 = vadd.f32 %v231, 1.0
        %v233 = vlog2.pop %v232
        %v234 = vmul.f32 %v233, 0.6931472
        %v235 = vmax.f32 %v224, 0.0
        %v236 = vmul.f32 %v224, %v227
        %v237 = vsub.f32 %v235, %v236
        %v238 = vadd.f32 %v237, %v234
        %v239 = vmul.f32 %v227, 2.0
        %v240 = vsub.f32 %v239, 1.0
        %v241 = vmul.f32 %v224, %v240
        %vm242 = vcmp.ge.f32.partialorder %v241, 0.0
        %v243 = vsel %vm242, %v231, 1.0
        %v244 = vrcp.pop %v232
        %v245 = vmul.f32 %v243, %v244
        %v246 = vmul.f32 %v245, %v245
        %v247 = vmul.f32 %v246, %v238
        %v248 = vmul.f32 %v247, %v222
        %v249 = vadd.f32 %v248, 0.0
        %v250 = vadd.f32 %v249, 0.0
        %s251 = scalar_lea.vmem %s193, 16 [#allocation5]
        %v252 = vld [vmem:[%s251] sm:$0xff]
        %vm253 = vcmp.eq.s32.totalorder %v219, 2
        %v254 = vsel %vm253, 1, 0
        %v255 = vcvt.s32.f32 %v254
        %v256 = vand.u32 2147483647, %v252
        %v257 = vsub.f32 0.0, %v256
        %v258 = vmul.f32 %v257, 1.442695
        %v259 = vpow.pop %v258
        %v260 = vadd.f32 %v259, 1.0
        %v261 = vlog2.pop %v260
        %v262 = vmul.f32 %v261, 0.6931472
        %v263 = vmax.f32 %v252, 0.0
        %v264 = vmul.f32 %v252, %v255
        %v265 = vsub.f32 %v263, %v264
        %v266 = vadd.f32 %v265, %v262
        %v267 = vmul.f32 %v255, 2.0
        %v268 = vsub.f32 %v267, 1.0
        %v269 = vmul.f32 %v252, %v268
        %vm270 = vcmp.ge.f32.partialorder %v269, 0.0
        %v271 = vsel %vm270, %v259, 1.0
        %v272 = vrcp.pop %v260
        %v273 = vmul.f32 %v271, %v272
        %v274 = vmul.f32 %v273, %v273
        %v275 = vmul.f32 %v274, %v266
        %v276 = vmul.f32 %v275, %v222
        %v277 = vadd.f32 %v276, 0.0
        %v278 = vadd.f32 %v250, %v277
        %s279 = scalar_lea.vmem %s193, 24 [#allocation5]
        %v280 = vld [vmem:[%s279] sm:$0xff]
        %vm281 = vcmp.eq.s32.totalorder %v219, 3
        %v282 = vsel %vm281, 1, 0
        %v283 = vcvt.s32.f32 %v282
        %v284 = vand.u32 2147483647, %v280
        %v285 = vsub.f32 0.0, %v284
        %v286 = vmul.f32 %v285, 1.442695
        %v287 = vpow.pop %v286
        %v288 = vadd.f32 %v287, 1.0
        %v289 = vlog2.pop %v288
        %v290 = vmul.f32 %v289, 0.6931472
        %v291 = vmax.f32 %v280, 0.0
        %v292 = vmul.f32 %v280, %v283
        %v293 = vsub.f32 %v291, %v292
        %v294 = vadd.f32 %v293, %v290
        %v295 = vmul.f32 %v283, 2.0
        %v296 = vsub.f32 %v295, 1.0
        %v297 = vmul.f32 %v280, %v296
        %vm298 = vcmp.ge.f32.partialorder %v297, 0.0
        %v299 = vsel %vm298, %v287, 1.0
        %v300 = vrcp.pop %v288
        %v301 = vmul.f32 %v299, %v300
        %v302 = vmul.f32 %v301, %v301
        %v303 = vmul.f32 %v302, %v294
        %v304 = vmul.f32 %v303, %v222
        %v305 = vadd.f32 %v304, 0.0
        %v306 = vadd.f32 %v278, %v305
        %307 = vst [vmem:[%s218] sm:$0xff] %v306
        %s308 = sand.u32 %s100, 1
        %s309 = scalar_lea.sflag [#allocation4], %s308
        %s310 = sand.u32 %s100, 1
        %s311 = smul.addr %s310, 8
        %s312 = scalar_lea.vmem [#allocation7], %s311
        // Predicated region
        $region37: #{tpu_custom_call.1} parent=27 // pred_check
          %p313 = pneg %p110
        $region38: #{tpu_custom_call.1} parent=27 // pred_check_branch
          %315 = sbr.rel (%p313) target = $region40
        $region39: #{tpu_custom_call.1} parent=27 // pred_region
          %s317 = ssub.s32 128, 128
          %318 = vsyncadd %s309, %s317
          %s319 = sadd.s32 %s27, %s26
          %s320 = smul.addr %s319, 128
          %s321 = scalar_lea.hbm %s2, %s320
          %s323 = sshll.u32 %s312, 4
          %s324 = int_to_ptr.vmem [resolvable:$true] %s323
          %326 = dma.vmem_to_hbm [thread:$0]  %s324, 128, %s321, %s309
        $region40: #{tpu_custom_call.1} parent=27 // pred_fallthru
          _
      $region28: #{tpu_custom_call.1} parent=5 // pred_fallthru
        _
      %p327 = scmp.le.s32.totalorder 2, %s17
      // Predicated region
      $region41: #{tpu_custom_call.1} parent=5 // pred_check
        %p328 = pneg %p327
      $region42: #{tpu_custom_call.1} parent=5 // pred_check_branch
        %330 = sbr.rel (%p328) target = $region44
      $region43: #{tpu_custom_call.1} parent=5 // pred_region
        %s331 = ssub.s32 %s17, 2
        // Predicated region
        $region45: #{tpu_custom_call.1} parent=43 // pred_check
          %p332 = pneg %p116
        $region46: #{tpu_custom_call.1} parent=43 // pred_check_branch
          %334 = sbr.rel (%p332) target = $region48
        $region47: #{tpu_custom_call.1} parent=43 // pred_region
          %s335 = sand.u32 %s101, 1
          %s336 = scalar_lea.sflag [#allocation4], %s335
          %s337 = sand.u32 %s101, 1
          %s338 = smul.addr %s337, 8
          %s339 = scalar_lea.vmem [#allocation7], %s338
          %340 = dma.done %s336, 128
        $region48: #{tpu_custom_call.1} parent=43 // pred_fallthru
          _
      $region44: #{tpu_custom_call.1} parent=5 // pred_fallthru
        _
    $region6: #{tpu_custom_call.1} parent=1 // loop_footer
      %s21 = sadd.s32 1, %s17
    $region7: #{tpu_custom_call.1} parent=1 // loop_footer_branch
      %16 = sbr.rel target = $region3
    $region8: #{tpu_custom_call.1} parent=1 // loop_exit
      _
    %341 = vsyncpa [#allocation3], 1
    %s342 = scalar_lea.sflag [#allocation3], 1
    %343 = vsyncpa %s342, 1
    %344 = vsyncpa [#allocation6], 1
    %s345 = scalar_lea.sflag [#allocation6], 1
    %346 = vsyncpa %s345, 1
    %347 = vsyncpa [#allocation4], 1
    %s348 = scalar_lea.sflag [#allocation4], 1
    %349 = vsyncpa %s348, 1

</llo_original>
